<compile_context>
chip_gen: v6e
topology: v6e:2x2x1
jax: 0.10.0
libtpu: 0.0.40
codegen_flags: <defaults>
</compile_context>

<pallas_src>
import functools

import jax
import jax.numpy as jnp
from jax import lax
from jax.experimental import pallas as pl
from jax.experimental.pallas import tpu as pltpu


def _round_up(x, m):
    return (x + m - 1) // m * m


@functools.lru_cache(maxsize=None)
def _vmem_limit_bytes():
    # Generation-aware scoped-VMEM limit (~65% of physical capacity).
    try:
        cap = int(pltpu.get_tpu_info().vmem_capacity_bytes)
        return int(0.65 * cap)
    except Exception:
        return 48 * 1024 * 1024          # conservative fallback


def _cast_pad2d(a, rows, cols, dtype):
    """Cast then zero-pad a 2-D array; both steps skipped when no-ops."""
    if a.dtype != dtype:
        a = a.astype(dtype)
    r, c = rows - a.shape[0], cols - a.shape[1]
    if r or c:
        a = jnp.pad(a, ((0, r), (0, c)))
    return a


# ----------------------------------------------------------------------------
# Kernel factory:  acc = patches @ W ; acc += bias ; [ReLU] ;
#                  [+ residual  |  + skip_x @ W_skip] ; store
# ----------------------------------------------------------------------------
def _make_kernel(nk, apply_relu, skip_mode, out_is_f32):
    """skip_mode in (None, 'add', 'conv'); nk = number of K reduction blocks."""
    use_scratch = (nk > 1) and not out_is_f32   # f32 out accumulates in o_ref

    def _epilogue(acc, b_ref, skip_refs, o_ref):
        acc = acc + b_ref[...]                   # folded BatchNorm bias
        if apply_relu:
            acc = jnp.maximum(acc, 0.0)
        if skip_mode == "conv":                  # fused 1x1 projection skip
            sx_ref, sw_ref = skip_refs
            acc = acc + jnp.dot(sx_ref[...], sw_ref[...],
                                preferred_element_type=jnp.float32)
        elif skip_mode == "add":                 # identity residual
            acc = acc + skip_refs[0][...].astype(jnp.float32)
        o_ref[...] = acc.astype(o_ref.dtype)

    def kernel(*refs):
        p_ref, w_ref, b_ref = refs[:3]
        n_skip = {"conv": 2, "add": 1, None: 0}[skip_mode]
        skip_refs = refs[3:3 + n_skip]
        o_ref = refs[3 + n_skip]

        prod = jnp.dot(p_ref[...], w_ref[...],
                       preferred_element_type=jnp.float32)

        if nk == 1:                              # single K block: no scratch
            _epilogue(prod, b_ref, skip_refs, o_ref)
            return

        acc_ref = refs[3 + n_skip + 1] if use_scratch else o_ref
        k = pl.program_id(1)

        @pl.when(k == 0)                         # write-through, no zero fill
        def _():
            acc_ref[...] = prod

        @pl.when(k > 0)
        def _():
            acc_ref[...] = acc_ref[...] + prod

        @pl.when(k == nk - 1)
        def _():
            _epilogue(acc_ref[...], b_ref, skip_refs, o_ref)

    return kernel, use_scratch


def _select_tm(m_pad, tk, cout_pad, skip_cin_pad, has_res, out_bytes,
               use_scratch, vmem_limit):
    """Largest TM from {2048..128} that divides m_pad, fits VMEM, and keeps
    >=2 row tiles when possible (v7x megacore sharding)."""
    def footprint(tm):
        b = 2 * tm * tk * 2                       # patches (bf16, 2x buffered)
        b += 2 * tk * cout_pad * 2                # weights
        b += 2 * cout_pad * 4                     # bias
        if skip_cin_pad:
            b += 2 * tm * skip_cin_pad * 2 + 2 * skip_cin_pad * cout_pad * 2
        if has_res:
            b += 2 * tm * cout_pad * 2
        b += 2 * tm * cout_pad * out_bytes        # output
        if use_scratch:
            b += tm * cout_pad * 4
        return b

    budget = int(0.7 * vmem_limit)
    cands = [t for t in (2048, 1024, 512, 256, 128)
             if t <= m_pad and m_pad % t == 0 and footprint(t) <= budget]
    if not cands:
        return 128
    multi = [t for t in cands if m_pad // t >= 2]
    return max(multi) if multi else max(cands)


# ----------------------------------------------------------------------------
# Pallas-call wrapper around the fused matmul + epilogue
# ----------------------------------------------------------------------------
def _fused_matmul(patches, tk, w_mat, bias, skip, apply_relu, out_dtype):
    """patches:(M,Kd_pad) bf16, w_mat:(Kd_pad,Cout_pad) bf16 (BN scale folded),
    bias:(1,Cout_pad) f32.  skip is None, ('add', res(M,Cout)) or
    ('conv', x(M,Cin), w_skip(Cin,Cout))."""
    M, kd_pad = patches.shape
    cout_pad = w_mat.shape[1]
    nk = kd_pad // tk
    out_is_f32 = (out_dtype == jnp.float32)
    out_bytes = 4 if out_is_f32 else 2
    skip_mode = None if skip is None else skip[0]

    m_pad = _round_up(M, 128)
    skip_cin_pad = _round_up(skip[1].shape[1], 128) if skip_mode == "conv" else 0

    vmem_limit = _vmem_limit_bytes()
    kernel, use_scratch = _make_kernel(nk, apply_relu, skip_mode, out_is_f32)
    tm = _select_tm(m_pad, tk, cout_pad, skip_cin_pad,
                    skip_mode == "add", out_bytes, use_scratch, vmem_limit)

    p = _cast_pad2d(patches, m_pad, kd_pad, jnp.bfloat16)

    if nk == 1:
        grid = (m_pad // tm,)
        dims = ("parallel",)
        p_map = lambda i: (i, 0)
        w_map = lambda i: (0, 0)
        row_map = lambda i: (i, 0)
        const_map = lambda i: (0, 0)
    else:
        grid = (m_pad // tm, nk)
        dims = ("parallel", "arbitrary")
        p_map = lambda i, k: (i, k)
        w_map = lambda i, k: (k, 0)
        row_map = lambda i, k: (i, 0)
        const_map = lambda i, k: (0, 0)

    in_specs = [
        pl.BlockSpec((tm, tk), p_map),                # im2col patches
        pl.BlockSpec((tk, cout_pad), w_map),          # BN-scaled weights
        pl.BlockSpec((1, cout_pad), const_map),       # folded BN bias
    ]
    args = [p, w_mat, bias]
    flops = 2 * m_pad * kd_pad * cout_pad
    bytes_accessed = (p.size * 2 + w_mat.size * 2 + bias.size * 4
                      + m_pad * cout_pad * out_bytes)

    if skip_mode == "conv":
        sx = _cast_pad2d(skip[1], m_pad, skip_cin_pad, jnp.bfloat16)
        sw = _cast_pad2d(skip[2], skip_cin_pad, cout_pad, jnp.bfloat16)
        in_specs += [pl.BlockSpec((tm, skip_cin_pad), row_map),
                     pl.BlockSpec((skip_cin_pad, cout_pad), const_map)]
        args += [sx, sw]
        flops += 2 * m_pad * skip_cin_pad * cout_pad
        bytes_accessed += sx.size * 2 + sw.size * 2
    elif skip_mode == "add":
        r = _cast_pad2d(skip[1], m_pad, cout_pad, jnp.bfloat16)
        in_specs += [pl.BlockSpec((tm, cout_pad), row_map)]
        args += [r]
        bytes_accessed += r.size * 2

    scratch = [pltpu.VMEM((tm, cout_pad), jnp.float32)] if use_scratch else []

    out = pl.pallas_call(
        kernel,
        out_shape=jax.ShapeDtypeStruct((m_pad, cout_pad), out_dtype),
        grid_spec=pltpu.PrefetchScalarGridSpec(
            num_scalar_prefetch=0,
            grid=grid,
            in_specs=in_specs,
            out_specs=pl.BlockSpec((tm, cout_pad), row_map),
            scratch_shapes=scratch,
        ),
        compiler_params=pltpu.CompilerParams(
            dimension_semantics=dims,
            vmem_limit_bytes=vmem_limit,
        ),
        cost_estimate=pl.CostEstimate(
            flops=int(flops), transcendentals=0,
            bytes_accessed=int(bytes_accessed)),
    )(*args)
    return out[:M]


# ----------------------------------------------------------------------------
# JAX glue: im2col (already bf16 and K-padded; single materialization)
# ----------------------------------------------------------------------------
def _extract_patches(x_sp, ksize, stride, kd_pad):
    N, Hp, Wp, cin = x_sp.shape
    Ho = (Hp - ksize) // stride + 1
    Wo = (Wp - ksize) // stride + 1
    cols = []
    for kh in range(ksize):
        for kw in range(ksize):
            cols.append(x_sp[:,
                             kh:kh + (Ho - 1) * stride + 1:stride,
                             kw:kw + (Wo - 1) * stride + 1:stride,
                             :])
    kd = ksize * ksize * cin
    if kd_pad > kd:                                   # fuse K padding here
        cols.append(jnp.zeros((N, Ho, Wo, kd_pad - kd), x_sp.dtype))
    return jnp.concatenate(cols, axis=-1)             # (N,Ho,Wo,kd_pad)


def _conv_block(x_nhwc, w_oihw, scale, bias, stride, pad, apply_relu,
                skip=None, out_dtype=jnp.bfloat16):
    cout, cin, ksz, _ = w_oihw.shape
    kd = ksz * ksz * cin
    cout_pad = _round_up(cout, 128)

    # Reduction tiling: single K block when it fits; 256-aligned for the
    # 2x256x256 MXUs on v6e/v7x (128 is enough for tiny K).
    if kd <= 1024:
        tk = _round_up(kd, 256) if kd > 128 else 128
        kd_pad = tk
    else:
        tk = 512
        kd_pad = _round_up(kd, tk)

    x_sp = jnp.pad(x_nhwc, ((0, 0), (pad, pad), (pad, pad), (0, 0))) if pad else x_nhwc
    patches = _extract_patches(x_sp, ksz, stride, kd_pad)
    N, Ho, Wo, _ = patches.shape
    M = N * Ho * Wo
    p2 = patches.reshape(M, kd_pad)

    # OIHW -> (KH,KW,Cin,Cout) -> (Kd,Cout); fold BN scale outside the kernel.
    w_mat = jnp.transpose(w_oihw, (2, 3, 1, 0)).reshape(kd, cout)
    w_mat = w_mat.astype(jnp.float32) * scale.reshape(1, cout).astype(jnp.float32)
    w_mat = _cast_pad2d(w_mat, kd_pad, cout_pad, jnp.bfloat16)
    b = _cast_pad2d(bias.reshape(1, cout).astype(jnp.float32), 1, cout_pad,
                    jnp.float32)

    if skip is not None:
        if skip[0] == "conv":
            sx = skip[1].reshape(M, skip[1].shape[-1])
            skip = ("conv", sx, skip[2])
        else:
            skip = ("add", skip[1].reshape(M, skip[1].shape[-1]))

    out = _fused_matmul(p2, tk, w_mat, b, skip, apply_relu, out_dtype)
    return out[:, :cout].reshape(N, Ho, Wo, cout)


def _bn_fold(gamma, beta, mean, var, eps=1e-5):
    scale = gamma / jnp.sqrt(var + eps)
    bias = beta - mean * scale
    return scale, bias


# ----------------------------------------------------------------------------
# ResBlock forward (NCHW in / NCHW out, like the PyTorch module)
# ----------------------------------------------------------------------------
def res_block_forward(x_nchw, params, stride):
    in_ch = x_nchw.shape[1]
    out_ch = params["w1"].shape[0]
    has_skip = (in_ch != out_ch) or (stride != 1)

    x = jnp.transpose(x_nchw, (0, 2, 3, 1)).astype(jnp.bfloat16)   # NHWC bf16

    s1, b1 = _bn_fold(params["bn1_gamma"], params["bn1_beta"],
                      params["bn1_mean"], params["bn1_var"])
    y = _conv_block(x, params["w1"], s1, b1, stride, 1, apply_relu=True,
                    skip=None, out_dtype=jnp.bfloat16)

    # Residual fused into conv2's epilogue (added after the second ReLU,
    # matching `x = self.conv(x); x += residual`).  With a projection skip,
    # the 1x1 conv runs inside the same kernel — no extra pallas_call and no
    # residual round trip through HBM.
    if has_skip:
        skip_x = x[:, ::stride, ::stride, :]                       # strided x
        w_skip = jnp.transpose(params["w_skip"][:, :, 0, 0])       # (Cin,Cout)
        skip = ("conv", skip_x, w_skip)
    else:
        skip = ("add", x)

    s2, b2 = _bn_fold(params["bn2_gamma"], params["bn2_beta"],
                      params["bn2_mean"], params["bn2_var"])
    out = _conv_block(y, params["w2"], s2, b2, 1, 1, apply_relu=True,
                      skip=skip, out_dtype=jnp.float32)
    return jnp.transpose(out, (0, 3, 1, 2))                        # NHWC->NCHW


# ----------------------------------------------------------------------------
# Pure-JAX reference (for correctness check)
# ----------------------------------------------------------------------------
def _ref_conv(x, w, stride, pad):
    return lax.conv_general_dilated(
        x, w, window_strides=(stride, stride),
        padding=((pad, pad), (pad, pad)),
        dimension_numbers=("NCHW", "OIHW", "NCHW"))


def res_block_reference(x, params, stride):
    in_ch = x.shape[1]
    out_ch = params["w1"].shape[0]
    has_skip = (in_ch != out_ch) or (stride != 1)
    residual = x
    if has_skip:
        residual = _ref_conv(x, params["w_skip"], stride, 0)

    def bn_relu(y, g, b, m, v):
        s = g / jnp.sqrt(v + 1e-5)
        bb = b - m * s
        return jnp.maximum(y * s[None, :, None, None] + bb[None, :, None, None], 0.0)

    y = _ref_conv(x, params["w1"], stride, 1)
    y = bn_relu(y, params["bn1_gamma"], params["bn1_beta"],
                params["bn1_mean"], params["bn1_var"])
    y = _ref_conv(y, params["w2"], 1, 1)
    y = bn_relu(y, params["bn2_gamma"], params["bn2_beta"],
                params["bn2_mean"], params["bn2_var"])
    return y + residual


def _make_params(key, in_ch, out_ch, with_skip):
    k1, k2, k3, k4, k5 = jax.random.split(key, 5)
    params = {
        "w1": 0.1 * jax.random.normal(k1, (out_ch, in_ch, 3, 3), jnp.float32),
        "w2": 0.1 * jax.random.normal(k2, (out_ch, out_ch, 3, 3), jnp.float32),
        "bn1_gamma": 1.0 + 0.1 * jax.random.normal(k4, (out_ch,), jnp.float32),
        "bn1_beta": 0.05 * jnp.arange(out_ch, dtype=jnp.float32),
        "bn1_mean": 0.1 * jax.random.normal(k5, (out_ch,), jnp.float32),
        "bn1_var": 1.0 + 0.1 * jnp.arange(out_ch, dtype=jnp.float32) / out_ch,
        "bn2_gamma": 0.9 * jnp.ones((out_ch,), jnp.float32),
        "bn2_beta": -0.02 * jnp.arange(out_ch, dtype=jnp.float32),
        "bn2_mean": 0.05 * jnp.ones((out_ch,), jnp.float32),
        "bn2_var": 1.2 * jnp.ones((out_ch,), jnp.float32),
    }
    if with_skip:
        params["w_skip"] = 0.1 * jax.random.normal(
            k3, (out_ch, in_ch, 1, 1), jnp.float32)
    return params


if __name__ == "__main__":
    key = jax.random.PRNGKey(0)
    kx1, kp1, kx2, kp2 = jax.random.split(key, 4)

    # Case 1: projection skip (in_ch != out_ch, stride 2) — 1x1 skip conv
    # fused into conv2's epilogue.
    in_ch, out_ch, stride = 4, 8, 2
    N, H, W = 2, 16, 16
    x1 = jax.random.normal(kx1, (N, in_ch, H, W), jnp.float32)
    p1 = _make_params(kp1, in_ch, out_ch, with_skip=True)

    out1 = jax.jit(functools.partial(res_block_forward, stride=stride))(x1, p1)
    out1 = jax.block_until_ready(out1)
    ref1 = jax.block_until_ready(res_block_reference(x1, p1, stride))
    assert out1.shape == (N, out_ch, H // stride, W // stride), out1.shape
    assert jnp.allclose(out1, ref1, atol=5e-2, rtol=5e-2), (
        float(jnp.max(jnp.abs(out1 - ref1))))

    # Case 2: identity residual (in_ch == out_ch, stride 1).
    ch = 8
    x2 = jax.random.normal(kx2, (N, ch, H, W), jnp.float32)
    p2 = _make_params(kp2, ch, ch, with_skip=False)

    out2 = jax.jit(functools.partial(res_block_forward, stride=1))(x2, p2)
    out2 = jax.block_until_ready(out2)
    ref2 = jax.block_until_ready(res_block_reference(x2, p2, 1))
    assert out2.shape == (N, ch, H, W), out2.shape
    assert jnp.allclose(out2, ref2, atol=5e-2, rtol=5e-2), (
        float(jnp.max(jnp.abs(out2 - ref2))))

    print("KERNEL_OK")
</pallas_src>

<mosaic_0001>
module attributes {stable_mosaic.version = 11 : i64} {
  func.func @kernel(%arg0: i32, %arg1: memref<128x128xbf16, #tpu.memory_space<vmem>>, %arg2: memref<128x128xbf16, #tpu.memory_space<vmem>>, %arg3: memref<1x128xf32, #tpu.memory_space<vmem>>, %arg4: memref<128x128xbf16, #tpu.memory_space<vmem>>) attributes {dimension_semantics = [#tpu.dimension_semantics<parallel>], iteration_bounds = array<i64: 1>, scalar_prefetch = 0 : i64, scratch_operands = 0 : i64, tpu.core_type = #tpu.core_type<tc>, window_params = [{transform_indices = @transform_0, window_bounds = array<i64: 128, 128>}, {pipeline_mode = #tpu.pipeline_mode<synchronous>, transform_indices = @transform_1, window_bounds = array<i64: 128, 128>}, {pipeline_mode = #tpu.pipeline_mode<synchronous>, transform_indices = @transform_2, window_bounds = array<i64: 1, 128>}, {transform_indices = @transform_3, window_bounds = array<i64: 128, 128>}]} {
    %c0 = arith.constant 0 : index
    %c0_0 = arith.constant 0 : index
    %0 = vector.load %arg1[%c0, %c0_0] : memref<128x128xbf16, #tpu.memory_space<vmem>>, vector<128x128xbf16>
    %c0_1 = arith.constant 0 : index
    %c0_2 = arith.constant 0 : index
    %1 = vector.load %arg2[%c0_1, %c0_2] : memref<128x128xbf16, #tpu.memory_space<vmem>>, vector<128x128xbf16>
    %cst = arith.constant dense<0.000000e+00> : vector<128x128xf32>
    %2 = tpu.matmul %0, %1, %cst {dimension_numbers = #tpu.dot_dimension_numbers<[1], [0], [0], [1], [0, 0, 1, 1], [], []>} : vector<128x128xbf16>, vector<128x128xbf16>, vector<128x128xf32> -> vector<128x128xf32>
    %c0_3 = arith.constant 0 : index
    %c0_4 = arith.constant 0 : index
    %3 = vector.load %arg3[%c0_3, %c0_4] : memref<1x128xf32, #tpu.memory_space<vmem>>, vector<1x128xf32>
    %4 = vector.broadcast %3 : vector<1x128xf32> to vector<128x128xf32>
    %5 = arith.addf %2, %4 : vector<128x128xf32>
    %cst_5 = arith.constant 0.000000e+00 : f32
    %6 = vector.broadcast %cst_5 : f32 to vector<128x128xf32>
    %7 = arith.maximumf %5, %6 : vector<128x128xf32>
    %8 = arith.truncf %7 : vector<128x128xf32> to vector<128x128xbf16>
    %c0_6 = arith.constant 0 : index
    %c0_7 = arith.constant 0 : index
    %9 = vector.load %arg4[%c0_6, %c0_7] : memref<128x128xbf16, #tpu.memory_space<vmem>>, vector<128x128xbf16>
    tpu.vector_store %arg4[%c0_6, %c0_7], %8 {strides = array<i32>} : memref<128x128xbf16, #tpu.memory_space<vmem>>, vector<128x128xbf16>,
    return
  }
  func.func @transform_0(%arg0: i32) -> (i32, i32) {
    %c0_i32 = arith.constant 0 : i32
    %c0_i32_0 = arith.constant 0 : i32
    return %arg0, %c0_i32 : i32, i32
  }
  func.func @transform_1(%arg0: i32) -> (i32, i32) {
    %c0_i32 = arith.constant 0 : i32
    %c0_i32_0 = arith.constant 0 : i32
    %c0_i32_1 = arith.constant 0 : i32
    return %c0_i32, %c0_i32_0 : i32, i32
  }
  func.func @transform_2(%arg0: i32) -> (i32, i32) {
    %c0_i32 = arith.constant 0 : i32
    %c0_i32_0 = arith.constant 0 : i32
    %c0_i32_1 = arith.constant 0 : i32
    return %c0_i32, %c0_i32_0 : i32, i32
  }
  func.func @transform_3(%arg0: i32) -> (i32, i32) {
    %c0_i32 = arith.constant 0 : i32
    %c0_i32_0 = arith.constant 0 : i32
    return %arg0, %c0_i32 : i32, i32
  }
}

module attributes {stable_mosaic.version = 11 : i64} {
  func.func @kernel(%arg0: i32, %arg1: memref<128x128xbf16, #tpu.memory_space<vmem>>, %arg2: memref<128x128xbf16, #tpu.memory_space<vmem>>, %arg3: memref<1x128xf32, #tpu.memory_space<vmem>>, %arg4: memref<128x128xbf16, #tpu.memory_space<vmem>>, %arg5: memref<128x128xbf16, #tpu.memory_space<vmem>>, %arg6: memref<128x128xf32, #tpu.memory_space<vmem>>) attributes {dimension_semantics = [#tpu.dimension_semantics<parallel>], iteration_bounds = array<i64: 1>, scalar_prefetch = 0 : i64, scratch_operands = 0 : i64, tpu.core_type = #tpu.core_type<tc>, window_params = [{transform_indices = @transform_0, window_bounds = array<i64: 128, 128>}, {pipeline_mode = #tpu.pipeline_mode<synchronous>, transform_indices = @transform_1, window_bounds = array<i64: 128, 128>}, {pipeline_mode = #tpu.pipeline_mode<synchronous>, transform_indices = @transform_2, window_bounds = array<i64: 1, 128>}, {transform_indices = @transform_3, window_bounds = array<i64: 128, 128>}, {pipeline_mode = #tpu.pipeline_mode<synchronous>, transform_indices = @transform_4, window_bounds = array<i64: 128, 128>}, {transform_indices = @transform_5, window_bounds = array<i64: 128, 128>}]} {
    %c0 = arith.constant 0 : index
    %c0_0 = arith.constant 0 : index
    %0 = vector.load %arg1[%c0, %c0_0] : memref<128x128xbf16, #tpu.memory_space<vmem>>, vector<128x128xbf16>
    %c0_1 = arith.constant 0 : index
    %c0_2 = arith.constant 0 : index
    %1 = vector.load %arg2[%c0_1, %c0_2] : memref<128x128xbf16, #tpu.memory_space<vmem>>, vector<128x128xbf16>
    %cst = arith.constant dense<0.000000e+00> : vector<128x128xf32>
    %2 = tpu.matmul %0, %1, %cst {dimension_numbers = #tpu.dot_dimension_numbers<[1], [0], [0], [1], [0, 0, 1, 1], [], []>} : vector<128x128xbf16>, vector<128x128xbf16>, vector<128x128xf32> -> vector<128x128xf32>
    %c0_3 = arith.constant 0 : index
    %c0_4 = arith.constant 0 : index
    %3 = vector.load %arg3[%c0_3, %c0_4] : memref<1x128xf32, #tpu.memory_space<vmem>>, vector<1x128xf32>
    %4 = vector.broadcast %3 : vector<1x128xf32> to vector<128x128xf32>
    %5 = arith.addf %2, %4 : vector<128x128xf32>
    %cst_5 = arith.constant 0.000000e+00 : f32
    %6 = vector.broadcast %cst_5 : f32 to vector<128x128xf32>
    %7 = arith.maximumf %5, %6 : vector<128x128xf32>
    %c0_6 = arith.constant 0 : index
    %c0_7 = arith.constant 0 : index
    %8 = vector.load %arg4[%c0_6, %c0_7] : memref<128x128xbf16, #tpu.memory_space<vmem>>, vector<128x128xbf16>
    %c0_8 = arith.constant 0 : index
    %c0_9 = arith.constant 0 : index
    %9 = vector.load %arg5[%c0_8, %c0_9] : memref<128x128xbf16, #tpu.memory_space<vmem>>, vector<128x128xbf16>
    %cst_10 = arith.constant dense<0.000000e+00> : vector<128x128xf32>
    %10 = tpu.matmul %8, %9, %cst_10 {dimension_numbers = #tpu.dot_dimension_numbers<[1], [0], [0], [1], [0, 0, 1, 1], [], []>} : vector<128x128xbf16>, vector<128x128xbf16>, vector<128x128xf32> -> vector<128x128xf32>
    %11 = arith.addf %7, %10 : vector<128x128xf32>
    %c0_11 = arith.constant 0 : index
    %c0_12 = arith.constant 0 : index
    %12 = vector.load %arg6[%c0_11, %c0_12] : memref<128x128xf32, #tpu.memory_space<vmem>>, vector<128x128xf32>
    tpu.vector_store %arg6[%c0_11, %c0_12], %11 {strides = array<i32>} : memref<128x128xf32, #tpu.memory_space<vmem>>, vector<128x128xf32>,
    return
  }
  func.func @transform_0(%arg0: i32) -> (i32, i32) {
    %c0_i32 = arith.constant 0 : i32
    %c0_i32_0 = arith.constant 0 : i32
    return %arg0, %c0_i32 : i32, i32
  }
  func.func @transform_1(%arg0: i32) -> (i32, i32) {
    %c0_i32 = arith.constant 0 : i32
    %c0_i32_0 = arith.constant 0 : i32
    %c0_i32_1 = arith.constant 0 : i32
    return %c0_i32, %c0_i32_0 : i32, i32
  }
  func.func @transform_2(%arg0: i32) -> (i32, i32) {
    %c0_i32 = arith.constant 0 : i32
    %c0_i32_0 = arith.constant 0 : i32
    %c0_i32_1 = arith.constant 0 : i32
    return %c0_i32, %c0_i32_0 : i32, i32
  }
  func.func @transform_3(%arg0: i32) -> (i32, i32) {
    %c0_i32 = arith.constant 0 : i32
    %c0_i32_0 = arith.constant 0 : i32
    return %arg0, %c0_i32 : i32, i32
  }
  func.func @transform_4(%arg0: i32) -> (i32, i32) {
    %c0_i32 = arith.constant 0 : i32
    %c0_i32_0 = arith.constant 0 : i32
    %c0_i32_1 = arith.constant 0 : i32
    return %c0_i32, %c0_i32_0 : i32, i32
  }
  func.func @transform_5(%arg0: i32) -> (i32, i32) {
    %c0_i32 = arith.constant 0 : i32
    %c0_i32_0 = arith.constant 0 : i32
    return %arg0, %c0_i32 : i32, i32
  }
}

</mosaic_0001>

<llo_original>
// kernel: res_block_forward.2
$region0: #{res_block_forward.2}
  #allocation0 [shape = 'u32[]', space=smem, size = 0x4, offset = 0x4, fixed_abs, tag = 'smem constant byte address 0x4 - core index']
  #allocation1 [shape = 'u32[144,128]{1,0:T(1,128)}', space=vmem, size = 0x12000, scoped, tag = 'internal scratch']
  %s0 = inlined_call_operand.vmem [shape: bf16[128,128], index: 0, kind: input, shape index: {}]
  %s1 = inlined_call_operand.vmem [shape: bf16[128,128], index: 1, kind: input, shape index: {}]
  %s2 = inlined_call_operand.vmem [shape: f32[1,128], index: 2, kind: input, shape index: {}]
  %s3 = inlined_call_operand.vmem [shape: bf16[128,128], index: 3, kind: output, shape index: {}]
  %s4 = sld [smem:[#allocation0]]
  $region22: #{res_block_forward.2} parent=0
    _
  %s6 = ssub.s32 1, %s4
  %s7 = scalar_select 0, %s6, %s4
  // Predicated region
  $region2: #{res_block_forward.2} parent=0 // pred_check
    _
  $region3: #{res_block_forward.2} parent=0 // pred_check_branch
    %9 = sbr.rel (0) target = $region5
  $region4: #{res_block_forward.2} parent=0 // pred_region
    _
  $region5: #{res_block_forward.2} parent=0 // pred_fallthru
    _
  // Predicated region
  $region6: #{res_block_forward.2} parent=0 // pred_check
    _
  $region7: #{res_block_forward.2} parent=0 // pred_check_branch
    %11 = sbr.rel (0) target = $region9
  $region8: #{res_block_forward.2} parent=0 // pred_region
    _
  $region9: #{res_block_forward.2} parent=0 // pred_fallthru
    _
  // Predicated region
  $region10: #{res_block_forward.2} parent=0 // pred_check
    _
  $region11: #{res_block_forward.2} parent=0 // pred_check_branch
    %13 = sbr.rel (0) target = $region13
  $region12: #{res_block_forward.2} parent=0 // pred_region
    _
  $region13: #{res_block_forward.2} parent=0 // pred_fallthru
    _
  %v15 = vld [vmem:[%s0] sm:$0xf]
  %v16 = vld [vmem:[%s0 + $0x4] sm:$0xf]
  %v17 = vld [vmem:[%s0 + $0x8] sm:$0xf]
  %v18 = vld [vmem:[%s0 + $0xc] sm:$0xf]
  %v19 = vld [vmem:[%s0 + $0x10] sm:$0xf]
  %v20 = vld [vmem:[%s0 + $0x14] sm:$0xf]
  %v21 = vld [vmem:[%s0 + $0x18] sm:$0xf]
  %v22 = vld [vmem:[%s0 + $0x1c] sm:$0xf]
  %v23 = vld [vmem:[%s0 + $0x20] sm:$0xf]
  %v24 = vld [vmem:[%s0 + $0x24] sm:$0xf]
  %v25 = vld [vmem:[%s0 + $0x28] sm:$0xf]
  %v26 = vld [vmem:[%s0 + $0x2c] sm:$0xf]
  %v27 = vld [vmem:[%s0 + $0x30] sm:$0xf]
  %v28 = vld [vmem:[%s0 + $0x34] sm:$0xf]
  %v29 = vld [vmem:[%s0 + $0x38] sm:$0xf]
  %v30 = vld [vmem:[%s0 + $0x3c] sm:$0xf]
  %v31 = vld [vmem:[%s1] sm:$0xf]
  %v32 = vld [vmem:[%s1 + $0x4] sm:$0xf]
  %v33 = vld [vmem:[%s1 + $0x8] sm:$0xf]
  %v34 = vld [vmem:[%s1 + $0xc] sm:$0xf]
  %v35 = vld [vmem:[%s1 + $0x10] sm:$0xf]
  %v36 = vld [vmem:[%s1 + $0x14] sm:$0xf]
  %v37 = vld [vmem:[%s1 + $0x18] sm:$0xf]
  %v38 = vld [vmem:[%s1 + $0x1c] sm:$0xf]
  %v39 = vld [vmem:[%s1 + $0x20] sm:$0xf]
  %v40 = vld [vmem:[%s1 + $0x24] sm:$0xf]
  %v41 = vld [vmem:[%s1 + $0x28] sm:$0xf]
  %v42 = vld [vmem:[%s1 + $0x2c] sm:$0xf]
  %v43 = vld [vmem:[%s1 + $0x30] sm:$0xf]
  %v44 = vld [vmem:[%s1 + $0x34] sm:$0xf]
  %v45 = vld [vmem:[%s1 + $0x38] sm:$0xf]
  %v46 = vld [vmem:[%s1 + $0x3c] sm:$0xf]
  %v47 = vld [vmem:[%s2] sm:$0x1]
  %v49 = vlaneseq
  %v50 = vshrl.u32 %v49, 7
  %v51 = vsub.s32 0, %v50
  %v52 = vrot.slane %v47, %v51
  %v70 = vunpack.c.l.b16 %v15
  %v71 = vunpack.c.l.b16 %v16
  %v72 = vunpack.c.l.b16 %v17
  %v73 = vunpack.c.l.b16 %v18
  %v74 = vunpack.c.l.b16 %v19
  %v75 = vunpack.c.l.b16 %v20
  %v76 = vunpack.c.l.b16 %v21
  %v77 = vunpack.c.l.b16 %v22
  %v78 = vunpack.c.l.b16 %v23
  %v79 = vunpack.c.l.b16 %v24
  %v80 = vunpack.c.l.b16 %v25
  %v81 = vunpack.c.l.b16 %v26
  %v82 = vunpack.c.l.b16 %v27
  %v83 = vunpack.c.l.b16 %v28
  %v84 = vunpack.c.l.b16 %v29
  %v85 = vunpack.c.l.b16 %v30
  %v86 = vpack.c.b16 %v71, %v70
  %v87 = vpack.c.b16 %v73, %v72
  %v88 = vpack.c.b16 %v75, %v74
  %v89 = vpack.c.b16 %v77, %v76
  %v90 = vpack.c.b16 %v79, %v78
  %v91 = vpack.c.b16 %v81, %v80
  %v92 = vpack.c.b16 %v83, %v82
  %v93 = vpack.c.b16 %v85, %v84
  %v118 = vunpack.c.l.b16 %v31
  %v119 = vunpack.c.l.b16 %v32
  %v120 = vunpack.c.l.b16 %v33
  %v121 = vunpack.c.l.b16 %v34
  %v122 = vunpack.c.l.b16 %v35
  %v123 = vunpack.c.l.b16 %v36
  %v124 = vunpack.c.l.b16 %v37
  %v125 = vunpack.c.l.b16 %v38
  %v126 = vunpack.c.l.b16 %v39
  %v127 = vunpack.c.l.b16 %v40
  %v128 = vunpack.c.l.b16 %v41
  %v129 = vunpack.c.l.b16 %v42
  %v130 = vunpack.c.l.b16 %v43
  %v131 = vunpack.c.l.b16 %v44
  %v132 = vunpack.c.l.b16 %v45
  %v133 = vunpack.c.l.b16 %v46
  %v134 = vpack.c.b16 %v119, %v118
  %v135 = vpack.c.b16 %v121, %v120
  %v136 = vpack.c.b16 %v123, %v122
  %v137 = vpack.c.b16 %v125, %v124
  %v138 = vpack.c.b16 %v127, %v126
  %v139 = vpack.c.b16 %v129, %v128
  %v140 = vpack.c.b16 %v131, %v130
  %v141 = vpack.c.b16 %v133, %v132
  %150 = vmatprep.subr.bf16.mxu0 0
  %151 = vmatpush1.bf16.msra.mxu0 %v141
  %152 = vmatprep.subr.bf16.mxu0 0
  %153 = vmatpush1.bf16.msra.mxu0 %v140
  %154 = vmatprep.subr.bf16.mxu0 0
  %155 = vmatpush1.bf16.msra.mxu0 %v139
  %156 = vmatprep.subr.bf16.mxu0 0
  %157 = vmatpush1.bf16.msra.mxu0 %v138
  %158 = vmatprep.subr.bf16.mxu0 0
  %159 = vmatpush1.bf16.msra.mxu0 %v137
  %160 = vmatprep.subr.bf16.mxu0 0
  %161 = vmatpush1.bf16.msra.mxu0 %v136
  %162 = vmatprep.subr.bf16.mxu0 0
  %163 = vmatpush1.bf16.msra.mxu0 %v135
  %164 = vmatprep.subr.bf16.mxu0 0
  %165 = vmatpush1.bf16.msra.mxu0 %v134
  %166 = vmatprep.subr.bf16.mxu0 0
  %167 = vmatpush2.bf16.msra.mxu0 0
  %168 = vmatprep.subr.bf16.mxu0 0
  %169 = vmatpush2.bf16.msra.mxu0 0
  %170 = vmatprep.subr.bf16.mxu0 0
  %171 = vmatpush2.bf16.msra.mxu0 0
  %172 = vmatprep.subr.bf16.mxu0 0
  %173 = vmatpush2.bf16.msra.mxu0 0
  %174 = vmatprep.subr.bf16.mxu0 0
  %175 = vmatpush2.bf16.msra.mxu0 0
  %176 = vmatprep.subr.bf16.mxu0 0
  %177 = vmatpush2.bf16.msra.mxu0 0
  %178 = vmatprep.subr.bf16.mxu0 0
  %179 = vmatpush2.bf16.msra.mxu0 0
  %180 = vmatprep.subr.bf16.mxu0 0
  %181 = vmatpush2.bf16.msra.mxu0 0
  %182 = vmatprep.mubr.bf16.mxu0 0
  %183 = vmatmul.mubr.bf16.gmra.mxu0 %v86
  %v184 = vpop.f32.mrf.mxu0
  %v185 = vadd.f32 %v52, %v184
  %v186 = vpop.f32.mrf.mxu0
  %v187 = vpop.f32.mrf.mxu0
  %v188 = vadd.f32 %v52, %v187
  %v189 = vpop.f32.mrf.mxu0
  %190 = vmatprep.mubr.bf16.mxu0 0
  %191 = vmatmul.mubr.bf16.gmra.mxu0 %v87
  %v192 = vpop.f32.mrf.mxu0
  %v193 = vadd.f32 %v52, %v192
  %v194 = vpop.f32.mrf.mxu0
  %v195 = vpop.f32.mrf.mxu0
  %v196 = vadd.f32 %v52, %v195
  %v197 = vpop.f32.mrf.mxu0
  %198 = vmatprep.mubr.bf16.mxu0 0
  %199 = vmatmul.mubr.bf16.gmra.mxu0 %v88
  %v200 = vpop.f32.mrf.mxu0
  %v201 = vadd.f32 %v52, %v200
  %v202 = vpop.f32.mrf.mxu0
  %v203 = vpop.f32.mrf.mxu0
  %v204 = vadd.f32 %v52, %v203
  %v205 = vpop.f32.mrf.mxu0
  %206 = vmatprep.mubr.bf16.mxu0 0
  %207 = vmatmul.mubr.bf16.gmra.mxu0 %v89
  %v208 = vpop.f32.mrf.mxu0
  %v209 = vadd.f32 %v52, %v208
  %v210 = vpop.f32.mrf.mxu0
  %v211 = vpop.f32.mrf.mxu0
  %v212 = vadd.f32 %v52, %v211
  %v213 = vpop.f32.mrf.mxu0
  %214 = vmatprep.mubr.bf16.mxu0 0
  %215 = vmatmul.mubr.bf16.gmra.mxu0 %v90
  %v216 = vpop.f32.mrf.mxu0
  %v217 = vadd.f32 %v52, %v216
  %v218 = vpop.f32.mrf.mxu0
  %v219 = vpop.f32.mrf.mxu0
  %v220 = vadd.f32 %v52, %v219
  %v221 = vpop.f32.mrf.mxu0
  %222 = vmatprep.mubr.bf16.mxu0 0
  %223 = vmatmul.mubr.bf16.gmra.mxu0 %v91
  %v224 = vpop.f32.mrf.mxu0
  %v225 = vadd.f32 %v52, %v224
  %v226 = vpop.f32.mrf.mxu0
  %v227 = vpop.f32.mrf.mxu0
  %v228 = vadd.f32 %v52, %v227
  %v229 = vpop.f32.mrf.mxu0
  %230 = vmatprep.mubr.bf16.mxu0 0
  %231 = vmatmul.mubr.bf16.gmra.mxu0 %v92
  %v232 = vpop.f32.mrf.mxu0
  %v233 = vadd.f32 %v52, %v232
  %v234 = vpop.f32.mrf.mxu0
  %v235 = vpop.f32.mrf.mxu0
  %v236 = vadd.f32 %v52, %v235
  %v237 = vpop.f32.mrf.mxu0
  %238 = vmatprep.mubr.bf16.mxu0 0
  %239 = vmatmul.mubr.bf16.gmra.mxu0 %v93
  %v240 = vpop.f32.mrf.mxu0
  %v241 = vadd.f32 %v52, %v240
  %v242 = vpop.f32.mrf.mxu0
  %v243 = vpop.f32.mrf.mxu0
  %v244 = vadd.f32 %v52, %v243
  %v245 = vpop.f32.mrf.mxu0
  %246 = vdwg.mxu0
  %v247 = vmax.f32 %v185, 0.0
  %v248 = vmax.f32 %v188, 0.0
  %v249 = vmax.f32 %v193, 0.0
  %v250 = vmax.f32 %v196, 0.0
  %v251 = vmax.f32 %v201, 0.0
  %v252 = vmax.f32 %v204, 0.0
  %v253 = vmax.f32 %v209, 0.0
  %v254 = vmax.f32 %v212, 0.0
  %v255 = vmax.f32 %v217, 0.0
  %v256 = vmax.f32 %v220, 0.0
  %v257 = vmax.f32 %v225, 0.0
  %v258 = vmax.f32 %v228, 0.0
  %v259 = vmax.f32 %v233, 0.0
  %v260 = vmax.f32 %v236, 0.0
  %v261 = vmax.f32 %v241, 0.0
  %v262 = vmax.f32 %v244, 0.0
  %v263 = vpack.c.bf16 %v248, %v247
  %v264 = vpack.c.bf16 %v250, %v249
  %v265 = vpack.c.bf16 %v252, %v251
  %v266 = vpack.c.bf16 %v254, %v253
  %v267 = vpack.c.bf16 %v256, %v255
  %v268 = vpack.c.bf16 %v258, %v257
  %v269 = vpack.c.bf16 %v260, %v259
  %v270 = vpack.c.bf16 %v262, %v261
  %v279 = vunpack.c.l.b16 %v263
  %v280 = vunpack.c.h.b16 %v263
  %v281 = vunpack.c.l.b16 %v264
  %v282 = vunpack.c.h.b16 %v264
  %v283 = vunpack.c.l.b16 %v265
  %v284 = vunpack.c.h.b16 %v265
  %v285 = vunpack.c.l.b16 %v266
  %v286 = vunpack.c.h.b16 %v266
  %v287 = vunpack.c.l.b16 %v267
  %v288 = vunpack.c.h.b16 %v267
  %v289 = vunpack.c.l.b16 %v268
  %v290 = vunpack.c.h.b16 %v268
  %v291 = vunpack.c.l.b16 %v269
  %v292 = vunpack.c.h.b16 %v269
  %v293 = vunpack.c.l.b16 %v270
  %v294 = vunpack.c.h.b16 %v270
  %v295 = vpack.c.b16 %v279, %v279
  %v296 = vpack.c.b16 %v280, %v280
  %v297 = vpack.c.b16 %v281, %v281
  %v298 = vpack.c.b16 %v282, %v282
  %v299 = vpack.c.b16 %v283, %v283
  %v300 = vpack.c.b16 %v284, %v284
  %v301 = vpack.c.b16 %v285, %v285
  %v302 = vpack.c.b16 %v286, %v286
  %v303 = vpack.c.b16 %v287, %v287
  %v304 = vpack.c.b16 %v288, %v288
  %v305 = vpack.c.b16 %v289, %v289
  %v306 = vpack.c.b16 %v290, %v290
  %v307 = vpack.c.b16 %v291, %v291
  %v308 = vpack.c.b16 %v292, %v292
  %v309 = vpack.c.b16 %v293, %v293
  %v310 = vpack.c.b16 %v294, %v294
  %327 = vst [vmem:[%s3] sm:$0xf] %v295
  %328 = vst [vmem:[%s3 + $0x4] sm:$0xf] %v296
  %329 = vst [vmem:[%s3 + $0x8] sm:$0xf] %v297
  %330 = vst [vmem:[%s3 + $0xc] sm:$0xf] %v298
  %331 = vst [vmem:[%s3 + $0x10] sm:$0xf] %v299
  %332 = vst [vmem:[%s3 + $0x14] sm:$0xf] %v300
  %333 = vst [vmem:[%s3 + $0x18] sm:$0xf] %v301
  %334 = vst [vmem:[%s3 + $0x1c] sm:$0xf] %v302
  %335 = vst [vmem:[%s3 + $0x20] sm:$0xf] %v303
  %336 = vst [vmem:[%s3 + $0x24] sm:$0xf] %v304
  %337 = vst [vmem:[%s3 + $0x28] sm:$0xf] %v305
  %338 = vst [vmem:[%s3 + $0x2c] sm:$0xf] %v306
  %339 = vst [vmem:[%s3 + $0x30] sm:$0xf] %v307
  %340 = vst [vmem:[%s3 + $0x34] sm:$0xf] %v308
  %341 = vst [vmem:[%s3 + $0x38] sm:$0xf] %v309
  %342 = vst [vmem:[%s3 + $0x3c] sm:$0xf] %v310
  // Predicated region
  $region14: #{res_block_forward.2} parent=0 // pred_check
    _
  $region15: #{res_block_forward.2} parent=0 // pred_check_branch
    %344 = sbr.rel (0) target = $region17
  $region16: #{res_block_forward.2} parent=0 // pred_region
    _
  $region17: #{res_block_forward.2} parent=0 // pred_fallthru
    _
  // Predicated region
  $region18: #{res_block_forward.2} parent=0 // pred_check
    _
  $region19: #{res_block_forward.2} parent=0 // pred_check_branch
    %346 = sbr.rel (0) target = $region21
  $region20: #{res_block_forward.2} parent=0 // pred_region
    _
  $region21: #{res_block_forward.2} parent=0 // pred_fallthru
    _

// kernel: res_block_forward.3
$region0: #{res_block_forward.3}
  #allocation0 [shape = 'u32[]', space=smem, size = 0x4, offset = 0x4, fixed_abs, tag = 'smem constant byte address 0x4 - core index']
  #allocation1 [shape = 'u32[144,128]{1,0:T(1,128)}', space=vmem, size = 0x12000, scoped, tag = 'internal scratch']
  %s0 = inlined_call_operand.vmem [shape: bf16[128,128], index: 0, kind: input, shape index: {}]
  %s1 = inlined_call_operand.vmem [shape: bf16[128,128], index: 1, kind: input, shape index: {}]
  %s2 = inlined_call_operand.vmem [shape: f32[1,128], index: 2, kind: input, shape index: {}]
  %s3 = inlined_call_operand.vmem [shape: bf16[128,128], index: 3, kind: input, shape index: {}]
  %s4 = inlined_call_operand.vmem [shape: bf16[128,128], index: 4, kind: input, shape index: {}]
  %s5 = inlined_call_operand.vmem [shape: f32[128,128], index: 5, kind: output, shape index: {}]
  %s6 = sld [smem:[#allocation0]]
  $region30: #{res_block_forward.3} parent=0
    _
  %s8 = ssub.s32 1, %s6
  %s9 = scalar_select 0, %s8, %s6
  // Predicated region
  $region2: #{res_block_forward.3} parent=0 // pred_check
    _
  $region3: #{res_block_forward.3} parent=0 // pred_check_branch
    %11 = sbr.rel (0) target = $region5
  $region4: #{res_block_forward.3} parent=0 // pred_region
    _
  $region5: #{res_block_forward.3} parent=0 // pred_fallthru
    _
  // Predicated region
  $region6: #{res_block_forward.3} parent=0 // pred_check
    _
  $region7: #{res_block_forward.3} parent=0 // pred_check_branch
    %13 = sbr.rel (0) target = $region9
  $region8: #{res_block_forward.3} parent=0 // pred_region
    _
  $region9: #{res_block_forward.3} parent=0 // pred_fallthru
    _
  // Predicated region
  $region10: #{res_block_forward.3} parent=0 // pred_check
    _
  $region11: #{res_block_forward.3} parent=0 // pred_check_branch
    %15 = sbr.rel (0) target = $region13
  $region12: #{res_block_forward.3} parent=0 // pred_region
    _
  $region13: #{res_block_forward.3} parent=0 // pred_fallthru
    _
  // Predicated region
  $region14: #{res_block_forward.3} parent=0 // pred_check
    _
  $region15: #{res_block_forward.3} parent=0 // pred_check_branch
    %17 = sbr.rel (0) target = $region17
  $region16: #{res_block_forward.3} parent=0 // pred_region
    _
  $region17: #{res_block_forward.3} parent=0 // pred_fallthru
    _
  // Predicated region
  $region18: #{res_block_forward.3} parent=0 // pred_check
    _
  $region19: #{res_block_forward.3} parent=0 // pred_check_branch
    %19 = sbr.rel (0) target = $region21
  $region20: #{res_block_forward.3} parent=0 // pred_region
    _
  $region21: #{res_block_forward.3} parent=0 // pred_fallthru
    _
  %v21 = vld [vmem:[%s0] sm:$0xf]
  %v22 = vld [vmem:[%s0 + $0x4] sm:$0xf]
  %v23 = vld [vmem:[%s0 + $0x8] sm:$0xf]
  %v24 = vld [vmem:[%s0 + $0xc] sm:$0xf]
  %v25 = vld [vmem:[%s0 + $0x10] sm:$0xf]
  %v26 = vld [vmem:[%s0 + $0x14] sm:$0xf]
  %v27 = vld [vmem:[%s0 + $0x18] sm:$0xf]
  %v28 = vld [vmem:[%s0 + $0x1c] sm:$0xf]
  %v29 = vld [vmem:[%s0 + $0x20] sm:$0xf]
  %v30 = vld [vmem:[%s0 + $0x24] sm:$0xf]
  %v31 = vld [vmem:[%s0 + $0x28] sm:$0xf]
  %v32 = vld [vmem:[%s0 + $0x2c] sm:$0xf]
  %v33 = vld [vmem:[%s0 + $0x30] sm:$0xf]
  %v34 = vld [vmem:[%s0 + $0x34] sm:$0xf]
  %v35 = vld [vmem:[%s0 + $0x38] sm:$0xf]
  %v36 = vld [vmem:[%s0 + $0x3c] sm:$0xf]
  %v37 = vld [vmem:[%s1] sm:$0xf]
  %v38 = vld [vmem:[%s1 + $0x4] sm:$0xf]
  %v39 = vld [vmem:[%s1 + $0x8] sm:$0xf]
  %v40 = vld [vmem:[%s1 + $0xc] sm:$0xf]
  %v41 = vld [vmem:[%s1 + $0x10] sm:$0xf]
  %v42 = vld [vmem:[%s1 + $0x14] sm:$0xf]
  %v43 = vld [vmem:[%s1 + $0x18] sm:$0xf]
  %v44 = vld [vmem:[%s1 + $0x1c] sm:$0xf]
  %v45 = vld [vmem:[%s1 + $0x20] sm:$0xf]
  %v46 = vld [vmem:[%s1 + $0x24] sm:$0xf]
  %v47 = vld [vmem:[%s1 + $0x28] sm:$0xf]
  %v48 = vld [vmem:[%s1 + $0x2c] sm:$0xf]
  %v49 = vld [vmem:[%s1 + $0x30] sm:$0xf]
  %v50 = vld [vmem:[%s1 + $0x34] sm:$0xf]
  %v51 = vld [vmem:[%s1 + $0x38] sm:$0xf]
  %v52 = vld [vmem:[%s1 + $0x3c] sm:$0xf]
  %v53 = vld [vmem:[%s2] sm:$0x1]
  %v55 = vlaneseq
  %v56 = vshrl.u32 %v55, 7
  %v57 = vsub.s32 0, %v56
  %v58 = vrot.slane %v53, %v57
  %v76 = vunpack.c.l.b16 %v21
  %v77 = vunpack.c.l.b16 %v22
  %v78 = vunpack.c.l.b16 %v23
  %v79 = vunpack.c.l.b16 %v24
  %v80 = vunpack.c.l.b16 %v25
  %v81 = vunpack.c.l.b16 %v26
  %v82 = vunpack.c.l.b16 %v27
  %v83 = vunpack.c.l.b16 %v28
  %v84 = vunpack.c.l.b16 %v29
  %v85 = vunpack.c.l.b16 %v30
  %v86 = vunpack.c.l.b16 %v31
  %v87 = vunpack.c.l.b16 %v32
  %v88 = vunpack.c.l.b16 %v33
  %v89 = vunpack.c.l.b16 %v34
  %v90 = vunpack.c.l.b16 %v35
  %v91 = vunpack.c.l.b16 %v36
  %v92 = vpack.c.b16 %v77, %v76
  %v93 = vpack.c.b16 %v79, %v78
  %v94 = vpack.c.b16 %v81, %v80
  %v95 = vpack.c.b16 %v83, %v82
  %v96 = vpack.c.b16 %v85, %v84
  %v97 = vpack.c.b16 %v87, %v86
  %v98 = vpack.c.b16 %v89, %v88
  %v99 = vpack.c.b16 %v91, %v90
  %v124 = vunpack.c.l.b16 %v37
  %v125 = vunpack.c.l.b16 %v38
  %v126 = vunpack.c.l.b16 %v39
  %v127 = vunpack.c.l.b16 %v40
  %v128 = vunpack.c.l.b16 %v41
  %v129 = vunpack.c.l.b16 %v42
  %v130 = vunpack.c.l.b16 %v43
  %v131 = vunpack.c.l.b16 %v44
  %v132 = vunpack.c.l.b16 %v45
  %v133 = vunpack.c.l.b16 %v46
  %v134 = vunpack.c.l.b16 %v47
  %v135 = vunpack.c.l.b16 %v48
  %v136 = vunpack.c.l.b16 %v49
  %v137 = vunpack.c.l.b16 %v50
  %v138 = vunpack.c.l.b16 %v51
  %v139 = vunpack.c.l.b16 %v52
  %v140 = vpack.c.b16 %v125, %v124
  %v141 = vpack.c.b16 %v127, %v126
  %v142 = vpack.c.b16 %v129, %v128
  %v143 = vpack.c.b16 %v131, %v130
  %v144 = vpack.c.b16 %v133, %v132
  %v145 = vpack.c.b16 %v135, %v134
  %v146 = vpack.c.b16 %v137, %v136
  %v147 = vpack.c.b16 %v139, %v138
  %156 = vmatprep.subr.bf16.mxu0 0
  %157 = vmatpush1.bf16.msra.mxu0 %v147
  %158 = vmatprep.subr.bf16.mxu0 0
  %159 = vmatpush1.bf16.msra.mxu0 %v146
  %160 = vmatprep.subr.bf16.mxu0 0
  %161 = vmatpush1.bf16.msra.mxu0 %v145
  %162 = vmatprep.subr.bf16.mxu0 0
  %163 = vmatpush1.bf16.msra.mxu0 %v144
  %164 = vmatprep.subr.bf16.mxu0 0
  %165 = vmatpush1.bf16.msra.mxu0 %v143
  %166 = vmatprep.subr.bf16.mxu0 0
  %167 = vmatpush1.bf16.msra.mxu0 %v142
  %168 = vmatprep.subr.bf16.mxu0 0
  %169 = vmatpush1.bf16.msra.mxu0 %v141
  %170 = vmatprep.subr.bf16.mxu0 0
  %171 = vmatpush1.bf16.msra.mxu0 %v140
  %172 = vmatprep.subr.bf16.mxu0 0
  %173 = vmatpush2.bf16.msra.mxu0 0
  %174 = vmatprep.subr.bf16.mxu0 0
  %175 = vmatpush2.bf16.msra.mxu0 0
  %176 = vmatprep.subr.bf16.mxu0 0
  %177 = vmatpush2.bf16.msra.mxu0 0
  %178 = vmatprep.subr.bf16.mxu0 0
  %179 = vmatpush2.bf16.msra.mxu0 0
  %180 = vmatprep.subr.bf16.mxu0 0
  %181 = vmatpush2.bf16.msra.mxu0 0
  %182 = vmatprep.subr.bf16.mxu0 0
  %183 = vmatpush2.bf16.msra.mxu0 0
  %184 = vmatprep.subr.bf16.mxu0 0
  %185 = vmatpush2.bf16.msra.mxu0 0
  %186 = vmatprep.subr.bf16.mxu0 0
  %187 = vmatpush2.bf16.msra.mxu0 0
  %188 = vmatprep.mubr.bf16.mxu0 0
  %189 = vmatmul.mubr.bf16.gmra.mxu0 %v92
  %v190 = vpop.f32.mrf.mxu0
  %v191 = vadd.f32 %v58, %v190
  %v192 = vpop.f32.mrf.mxu0
  %v193 = vpop.f32.mrf.mxu0
  %v194 = vadd.f32 %v58, %v193
  %v195 = vpop.f32.mrf.mxu0
  %196 = vmatprep.mubr.bf16.mxu0 0
  %197 = vmatmul.mubr.bf16.gmra.mxu0 %v93
  %v198 = vpop.f32.mrf.mxu0
  %v199 = vadd.f32 %v58, %v198
  %v200 = vpop.f32.mrf.mxu0
  %v201 = vpop.f32.mrf.mxu0
  %v202 = vadd.f32 %v58, %v201
  %v203 = vpop.f32.mrf.mxu0
  %204 = vmatprep.mubr.bf16.mxu0 0
  %205 = vmatmul.mubr.bf16.gmra.mxu0 %v94
  %v206 = vpop.f32.mrf.mxu0
  %v207 = vadd.f32 %v58, %v206
  %v208 = vpop.f32.mrf.mxu0
  %v209 = vpop.f32.mrf.mxu0
  %v210 = vadd.f32 %v58, %v209
  %v211 = vpop.f32.mrf.mxu0
  %212 = vmatprep.mubr.bf16.mxu0 0
  %213 = vmatmul.mubr.bf16.gmra.mxu0 %v95
  %v214 = vpop.f32.mrf.mxu0
  %v215 = vadd.f32 %v58, %v214
  %v216 = vpop.f32.mrf.mxu0
  %v217 = vpop.f32.mrf.mxu0
  %v218 = vadd.f32 %v58, %v217
  %v219 = vpop.f32.mrf.mxu0
  %220 = vmatprep.mubr.bf16.mxu0 0
  %221 = vmatmul.mubr.bf16.gmra.mxu0 %v96
  %v222 = vpop.f32.mrf.mxu0
  %v223 = vadd.f32 %v58, %v222
  %v224 = vpop.f32.mrf.mxu0
  %v225 = vpop.f32.mrf.mxu0
  %v226 = vadd.f32 %v58, %v225
  %v227 = vpop.f32.mrf.mxu0
  %228 = vmatprep.mubr.bf16.mxu0 0
  %229 = vmatmul.mubr.bf16.gmra.mxu0 %v97
  %v230 = vpop.f32.mrf.mxu0
  %v231 = vadd.f32 %v58, %v230
  %v232 = vpop.f32.mrf.mxu0
  %v233 = vpop.f32.mrf.mxu0
  %v234 = vadd.f32 %v58, %v233
  %v235 = vpop.f32.mrf.mxu0
  %236 = vmatprep.mubr.bf16.mxu0 0
  %237 = vmatmul.mubr.bf16.gmra.mxu0 %v98
  %v238 = vpop.f32.mrf.mxu0
  %v239 = vadd.f32 %v58, %v238
  %v240 = vpop.f32.mrf.mxu0
  %v241 = vpop.f32.mrf.mxu0
  %v242 = vadd.f32 %v58, %v241
  %v243 = vpop.f32.mrf.mxu0
  %244 = vmatprep.mubr.bf16.mxu0 0
  %245 = vmatmul.mubr.bf16.gmra.mxu0 %v99
  %v246 = vpop.f32.mrf.mxu0
  %v247 = vadd.f32 %v58, %v246
  %v248 = vpop.f32.mrf.mxu0
  %v249 = vpop.f32.mrf.mxu0
  %v250 = vadd.f32 %v58, %v249
  %v251 = vpop.f32.mrf.mxu0
  %252 = vdwg.mxu0
  %v253 = vmax.f32 %v191, 0.0
  %v254 = vmax.f32 %v194, 0.0
  %v255 = vmax.f32 %v199, 0.0
  %v256 = vmax.f32 %v202, 0.0
  %v257 = vmax.f32 %v207, 0.0
  %v258 = vmax.f32 %v210, 0.0
  %v259 = vmax.f32 %v215, 0.0
  %v260 = vmax.f32 %v218, 0.0
  %v261 = vmax.f32 %v223, 0.0
  %v262 = vmax.f32 %v226, 0.0
  %v263 = vmax.f32 %v231, 0.0
  %v264 = vmax.f32 %v234, 0.0
  %v265 = vmax.f32 %v239, 0.0
  %v266 = vmax.f32 %v242, 0.0
  %v267 = vmax.f32 %v247, 0.0
  %v268 = vmax.f32 %v250, 0.0
  %v269 = vld [vmem:[%s3] sm:$0xf]
  %v270 = vld [vmem:[%s3 + $0x4] sm:$0xf]
  %v271 = vld [vmem:[%s3 + $0x8] sm:$0xf]
  %v272 = vld [vmem:[%s3 + $0xc] sm:$0xf]
  %v273 = vld [vmem:[%s3 + $0x10] sm:$0xf]
  %v274 = vld [vmem:[%s3 + $0x14] sm:$0xf]
  %v275 = vld [vmem:[%s3 + $0x18] sm:$0xf]
  %v276 = vld [vmem:[%s3 + $0x1c] sm:$0xf]
  %v277 = vld [vmem:[%s3 + $0x20] sm:$0xf]
  %v278 = vld [vmem:[%s3 + $0x24] sm:$0xf]
  %v279 = vld [vmem:[%s3 + $0x28] sm:$0xf]
  %v280 = vld [vmem:[%s3 + $0x2c] sm:$0xf]
  %v281 = vld [vmem:[%s3 + $0x30] sm:$0xf]
  %v282 = vld [vmem:[%s3 + $0x34] sm:$0xf]
  %v283 = vld [vmem:[%s3 + $0x38] sm:$0xf]
  %v284 = vld [vmem:[%s3 + $0x3c] sm:$0xf]
  %v285 = vld [vmem:[%s4] sm:$0xf]
  %v286 = vld [vmem:[%s4 + $0x4] sm:$0xf]
  %v287 = vld [vmem:[%s4 + $0x8] sm:$0xf]
  %v288 = vld [vmem:[%s4 + $0xc] sm:$0xf]
  %v289 = vld [vmem:[%s4 + $0x10] sm:$0xf]
  %v290 = vld [vmem:[%s4 + $0x14] sm:$0xf]
  %v291 = vld [vmem:[%s4 + $0x18] sm:$0xf]
  %v292 = vld [vmem:[%s4 + $0x1c] sm:$0xf]
  %v293 = vld [vmem:[%s4 + $0x20] sm:$0xf]
  %v294 = vld [vmem:[%s4 + $0x24] sm:$0xf]
  %v295 = vld [vmem:[%s4 + $0x28] sm:$0xf]
  %v296 = vld [vmem:[%s4 + $0x2c] sm:$0xf]
  %v297 = vld [vmem:[%s4 + $0x30] sm:$0xf]
  %v298 = vld [vmem:[%s4 + $0x34] sm:$0xf]
  %v299 = vld [vmem:[%s4 + $0x38] sm:$0xf]
  %v300 = vld [vmem:[%s4 + $0x3c] sm:$0xf]
  %v317 = vunpack.c.l.b16 %v269
  %v318 = vunpack.c.l.b16 %v270
  %v319 = vunpack.c.l.b16 %v271
  %v320 = vunpack.c.l.b16 %v272
  %v321 = vunpack.c.l.b16 %v273
  %v322 = vunpack.c.l.b16 %v274
  %v323 = vunpack.c.l.b16 %v275
  %v324 = vunpack.c.l.b16 %v276
  %v325 = vunpack.c.l.b16 %v277
  %v326 = vunpack.c.l.b16 %v278
  %v327 = vunpack.c.l.b16 %v279
  %v328 = vunpack.c.l.b16 %v280
  %v329 = vunpack.c.l.b16 %v281
  %v330 = vunpack.c.l.b16 %v282
  %v331 = vunpack.c.l.b16 %v283
  %v332 = vunpack.c.l.b16 %v284
  %v333 = vpack.c.b16 %v318, %v317
  %v334 = vpack.c.b16 %v320, %v319
  %v335 = vpack.c.b16 %v322, %v321
  %v336 = vpack.c.b16 %v324, %v323
  %v337 = vpack.c.b16 %v326, %v325
  %v338 = vpack.c.b16 %v328, %v327
  %v339 = vpack.c.b16 %v330, %v329
  %v340 = vpack.c.b16 %v332, %v331
  %v365 = vunpack.c.l.b16 %v285
  %v366 = vunpack.c.l.b16 %v286
  %v367 = vunpack.c.l.b16 %v287
  %v368 = vunpack.c.l.b16 %v288
  %v369 = vunpack.c.l.b16 %v289
  %v370 = vunpack.c.l.b16 %v290
  %v371 = vunpack.c.l.b16 %v291
  %v372 = vunpack.c.l.b16 %v292
  %v373 = vunpack.c.l.b16 %v293
  %v374 = vunpack.c.l.b16 %v294
  %v375 = vunpack.c.l.b16 %v295
  %v376 = vunpack.c.l.b16 %v296
  %v377 = vunpack.c.l.b16 %v297
  %v378 = vunpack.c.l.b16 %v298
  %v379 = vunpack.c.l.b16 %v299
  %v380 = vunpack.c.l.b16 %v300
  %v381 = vpack.c.b16 %v366, %v365
  %v382 = vpack.c.b16 %v368, %v367
  %v383 = vpack.c.b16 %v370, %v369
  %v384 = vpack.c.b16 %v372, %v371
  %v385 = vpack.c.b16 %v374, %v373
  %v386 = vpack.c.b16 %v376, %v375
  %v387 = vpack.c.b16 %v378, %v377
  %v388 = vpack.c.b16 %v380, %v379
  %397 = vmatprep.subr.bf16.mxu0 0
  %398 = vmatpush1.bf16.msra.mxu0 %v388
  %399 = vmatprep.subr.bf16.mxu0 0
  %400 = vmatpush1.bf16.msra.mxu0 %v387
  %401 = vmatprep.subr.bf16.mxu0 0
  %402 = vmatpush1.bf16.msra.mxu0 %v386
  %403 = vmatprep.subr.bf16.mxu0 0
  %404 = vmatpush1.bf16.msra.mxu0 %v385
  %405 = vmatprep.subr.bf16.mxu0 0
  %406 = vmatpush1.bf16.msra.mxu0 %v384
  %407 = vmatprep.subr.bf16.mxu0 0
  %408 = vmatpush1.bf16.msra.mxu0 %v383
  %409 = vmatprep.subr.bf16.mxu0 0
  %410 = vmatpush1.bf16.msra.mxu0 %v382
  %411 = vmatprep.subr.bf16.mxu0 0
  %412 = vmatpush1.bf16.msra.mxu0 %v381
  %413 = vmatprep.subr.bf16.mxu0 0
  %414 = vmatpush2.bf16.msra.mxu0 0
  %415 = vmatprep.subr.bf16.mxu0 0
  %416 = vmatpush2.bf16.msra.mxu0 0
  %417 = vmatprep.subr.bf16.mxu0 0
  %418 = vmatpush2.bf16.msra.mxu0 0
  %419 = vmatprep.subr.bf16.mxu0 0
  %420 = vmatpush2.bf16.msra.mxu0 0
  %421 = vmatprep.subr.bf16.mxu0 0
  %422 = vmatpush2.bf16.msra.mxu0 0
  %423 = vmatprep.subr.bf16.mxu0 0
  %424 = vmatpush2.bf16.msra.mxu0 0
  %425 = vmatprep.subr.bf16.mxu0 0
  %426 = vmatpush2.bf16.msra.mxu0 0
  %427 = vmatprep.subr.bf16.mxu0 0
  %428 = vmatpush2.bf16.msra.mxu0 0
  %429 = vmatprep.mubr.bf16.mxu0 0
  %430 = vmatmul.mubr.bf16.gmra.mxu0 %v333
  %v431 = vpop.f32.mrf.mxu0
  %v432 = vadd.f32 0.0, %v431
  %v433 = vpop.f32.mrf.mxu0
  %v434 = vpop.f32.mrf.mxu0
  %v435 = vadd.f32 0.0, %v434
  %v436 = vpop.f32.mrf.mxu0
  %437 = vmatprep.mubr.bf16.mxu0 0
  %438 = vmatmul.mubr.bf16.gmra.mxu0 %v334
  %v439 = vpop.f32.mrf.mxu0
  %v440 = vadd.f32 0.0, %v439
  %v441 = vpop.f32.mrf.mxu0
  %v442 = vpop.f32.mrf.mxu0
  %v443 = vadd.f32 0.0, %v442
  %v444 = vpop.f32.mrf.mxu0
  %445 = vmatprep.mubr.bf16.mxu0 0
  %446 = vmatmul.mubr.bf16.gmra.mxu0 %v335
  %v447 = vpop.f32.mrf.mxu0
  %v448 = vadd.f32 0.0, %v447
  %v449 = vpop.f32.mrf.mxu0
  %v450 = vpop.f32.mrf.mxu0
  %v451 = vadd.f32 0.0, %v450
  %v452 = vpop.f32.mrf.mxu0
  %453 = vmatprep.mubr.bf16.mxu0 0
  %454 = vmatmul.mubr.bf16.gmra.mxu0 %v336
  %v455 = vpop.f32.mrf.mxu0
  %v456 = vadd.f32 0.0, %v455
  %v457 = vpop.f32.mrf.mxu0
  %v458 = vpop.f32.mrf.mxu0
  %v459 = vadd.f32 0.0, %v458
  %v460 = vpop.f32.mrf.mxu0
  %461 = vmatprep.mubr.bf16.mxu0 0
  %462 = vmatmul.mubr.bf16.gmra.mxu0 %v337
  %v463 = vpop.f32.mrf.mxu0
  %v464 = vadd.f32 0.0, %v463
  %v465 = vpop.f32.mrf.mxu0
  %v466 = vpop.f32.mrf.mxu0
  %v467 = vadd.f32 0.0, %v466
  %v468 = vpop.f32.mrf.mxu0
  %469 = vmatprep.mubr.bf16.mxu0 0
  %470 = vmatmul.mubr.bf16.gmra.mxu0 %v338
  %v471 = vpop.f32.mrf.mxu0
  %v472 = vadd.f32 0.0, %v471
  %v473 = vpop.f32.mrf.mxu0
  %v474 = vpop.f32.mrf.mxu0
  %v475 = vadd.f32 0.0, %v474
  %v476 = vpop.f32.mrf.mxu0
  %477 = vmatprep.mubr.bf16.mxu0 0
  %478 = vmatmul.mubr.bf16.gmra.mxu0 %v339
  %v479 = vpop.f32.mrf.mxu0
  %v480 = vadd.f32 0.0, %v479
  %v481 = vpop.f32.mrf.mxu0
  %v482 = vpop.f32.mrf.mxu0
  %v483 = vadd.f32 0.0, %v482
  %v484 = vpop.f32.mrf.mxu0
  %485 = vmatprep.mubr.bf16.mxu0 0
  %486 = vmatmul.mubr.bf16.gmra.mxu0 %v340
  %v487 = vpop.f32.mrf.mxu0
  %v488 = vadd.f32 0.0, %v487
  %v489 = vpop.f32.mrf.mxu0
  %v490 = vpop.f32.mrf.mxu0
  %v491 = vadd.f32 0.0, %v490
  %v492 = vpop.f32.mrf.mxu0
  %493 = vdwg.mxu0
  %v494 = vadd.f32 %v253, %v432
  %v495 = vadd.f32 %v254, %v435
  %v496 = vadd.f32 %v255, %v440
  %v497 = vadd.f32 %v256, %v443
  %v498 = vadd.f32 %v257, %v448
  %v499 = vadd.f32 %v258, %v451
  %v500 = vadd.f32 %v259, %v456
  %v501 = vadd.f32 %v260, %v459
  %v502 = vadd.f32 %v261, %v464
  %v503 = vadd.f32 %v262, %v467
  %v504 = vadd.f32 %v263, %v472
  %v505 = vadd.f32 %v264, %v475
  %v506 = vadd.f32 %v265, %v480
  %v507 = vadd.f32 %v266, %v483
  %v508 = vadd.f32 %v267, %v488
  %v509 = vadd.f32 %v268, %v491
  %510 = vst [vmem:[%s5] sm:$0xff] %v494
  %511 = vst [vmem:[%s5 + $0x8] sm:$0xff] %v495
  %512 = vst [vmem:[%s5 + $0x10] sm:$0xff] %v496
  %513 = vst [vmem:[%s5 + $0x18] sm:$0xff] %v497
  %514 = vst [vmem:[%s5 + $0x20] sm:$0xff] %v498
  %515 = vst [vmem:[%s5 + $0x28] sm:$0xff] %v499
  %516 = vst [vmem:[%s5 + $0x30] sm:$0xff] %v500
  %517 = vst [vmem:[%s5 + $0x38] sm:$0xff] %v501
  %518 = vst [vmem:[%s5 + $0x40] sm:$0xff] %v502
  %519 = vst [vmem:[%s5 + $0x48] sm:$0xff] %v503
  %520 = vst [vmem:[%s5 + $0x50] sm:$0xff] %v504
  %521 = vst [vmem:[%s5 + $0x58] sm:$0xff] %v505
  %522 = vst [vmem:[%s5 + $0x60] sm:$0xff] %v506
  %523 = vst [vmem:[%s5 + $0x68] sm:$0xff] %v507
  %524 = vst [vmem:[%s5 + $0x70] sm:$0xff] %v508
  %525 = vst [vmem:[%s5 + $0x78] sm:$0xff] %v509
  // Predicated region
  $region22: #{res_block_forward.3} parent=0 // pred_check
    _
  $region23: #{res_block_forward.3} parent=0 // pred_check_branch
    %527 = sbr.rel (0) target = $region25
  $region24: #{res_block_forward.3} parent=0 // pred_region
    _
  $region25: #{res_block_forward.3} parent=0 // pred_fallthru
    _
  // Predicated region
  $region26: #{res_block_forward.3} parent=0 // pred_check
    _
  $region27: #{res_block_forward.3} parent=0 // pred_check_branch
    %529 = sbr.rel (0) target = $region29
  $region28: #{res_block_forward.3} parent=0 // pred_region
    _
  $region29: #{res_block_forward.3} parent=0 // pred_fallthru
    _

</llo_original>
